<compile_context>
chip_gen: v5e
topology: v5e:2x2
jax: 0.10.0
libtpu: 0.0.40
codegen_flags: <defaults>
</compile_context>

<pallas_src>
import functools

import jax
import jax.numpy as jnp
from jax.experimental import pallas as pl
from jax.experimental.pallas import tpu as pltpu


def _mean_pool_kernel(emb_ref, mask_ref, out_ref, msum_ref, *, use_mxu):
    # emb_ref  : (TB, TS, TH)                  native dtype
    # mask_ref : (TB, 1, TS) emb dtype (MXU)   or   (TB, TS) f32 (VPU)
    # out_ref  : (TB, TH)    f32 resident accumulator across the S grid axis
    # msum_ref : (TB, 1)     f32 VMEM scratch (mask-count accumulator)
    s = pl.program_id(2)

    @pl.when(s == 0)
    def _init():
        out_ref[...] = jnp.zeros_like(out_ref)
        msum_ref[...] = jnp.zeros_like(msum_ref)

    if use_mxu:
        # Masked sum over S on the MXU: no f32 temporaries, no mask relayout,
        # exact products (0/1 mask) with f32 accumulation.
        mask = mask_ref[...]                                     # (TB, 1, TS)
        part = jnp.einsum("bqs,bsh->bqh", mask, emb_ref[...],
                          preferred_element_type=jnp.float32)    # (TB, 1, TH)
        out_ref[...] += part[:, 0, :]
        msum_ref[...] += jnp.sum(mask.astype(jnp.float32), axis=2)
    else:
        # Exact f32 VPU path (also covers other dtypes via promotion).
        mask = mask_ref[...]                                     # (TB, TS) f32
        out_ref[...] += jnp.sum(emb_ref[...] * mask[:, :, None], axis=1)
        msum_ref[...] += jnp.sum(mask, axis=1, keepdims=True)

    @pl.when(s == pl.num_programs(2) - 1)
    def _finalize():
        denom = jnp.maximum(msum_ref[...], 1e-9)                 # clamp(min=1e-9)
        out_ref[...] = out_ref[...] * pl.reciprocal(denom, approx=False)


def _round_up(x, m):
    return (x + m - 1) // m * m


def _vmem_limit_bytes():
    """Scoped-VMEM limit derived from the chip generation (~3/4 of physical)."""
    cap = 64 * 1024 * 1024
    try:
        info = pltpu.get_tpu_info()
        cap = int(getattr(info, "vmem_capacity_bytes", cap) or cap)
    except Exception:
        pass
    return min(cap * 3 // 4, 96 * 1024 * 1024)


def _pick_tiles(B_pad, S, H, itemsize, vmem_limit):
    """Choose (TB, TS, TH): sublane/lane-dense tiles sized for the VMEM budget."""
    # Batch block: sublane-dense; keep >= 2 batch blocks when possible so the
    # leading "parallel" axis can be sharded across cores (v7x megacore).
    TB = 16 if (B_pad % 16 == 0 and B_pad // 16 >= 2) else 8

    # Per-tile byte budget for the streamed embedding block.  Pallas
    # double-buffers it; together with in-kernel temporaries this stays well
    # under the scoped limit (~16 MiB tiles on 128 MiB parts, ~8 MiB on v7x).
    tile_budget = max(4 * 1024 * 1024, min(vmem_limit // 6, 16 * 1024 * 1024))

    s_divs = [c for c in (16384, 8192, 4096, 2048, 1024, 512, 256, 128)
              if S % c == 0]
    if not s_divs:
        s_divs = [S]                      # full-sequence block is always legal

    # Feature blocks: prefer full H; split into multiples of 128 when the tile
    # would not fit, or when the batch axis has a single block (so the second
    # "parallel" axis gets extent >= 2 for megacore).  Re-reading the tiny
    # mask once per H block costs ~1/H of the traffic - negligible.
    h_divs = [H]
    if H % 128 == 0 and H > 128:
        splits = [c for c in (4096, 2048, 1024, 512, 256, 128)
                  if c < H and H % c == 0]
        if B_pad // TB < 2 and splits:
            h_divs = splits               # force an H split for megacore
        else:
            h_divs = [H] + splits

    for TH in h_divs:
        fitting = [ts for ts in s_divs if TB * ts * TH * itemsize <= tile_budget]
        if fitting:
            return TB, max(fitting), TH

    # Nothing fits (e.g. indivisible S and very large H): take the smallest
    # legal tile and rely on the raised VMEM limit.
    # TODO(synk): pad S up to a multiple of 128 if this fallback matters in practice.
    return TB, min(s_divs), min(h_divs)


def mean_pooling(model_output, attention_mask):
    """Pallas equivalent of MeanPooling.forward.

    model_output: tuple/list whose first element is token_embeddings (B, S, H)
    attention_mask: (B, S) 0/1 mask (any numeric dtype)
    returns: (B, H) float32
    """
    token_embeddings = model_output[0]
    B, S, H = token_embeddings.shape
    emb_dtype = token_embeddings.dtype
    itemsize = jnp.dtype(emb_dtype).itemsize

    use_mxu = emb_dtype == jnp.bfloat16

    if use_mxu:
        # (B, 1, S) in the embedding dtype: feeds the MXU einsum directly,
        # S stays on lanes, 0/1 values are exact in bf16.
        mask = attention_mask.reshape(B, 1, S).astype(emb_dtype)
    else:
        # Lane-dense (B, S) f32 mask for the exact VPU path.
        mask = attention_mask.astype(jnp.float32)

    # Pad the batch to a multiple of 8 so every tile stays sublane-dense.
    B_pad = _round_up(B, 8)
    if B_pad != B:
        pad = B_pad - B
        token_embeddings = jnp.pad(token_embeddings, ((0, pad), (0, 0), (0, 0)))
        mask = jnp.pad(mask, ((0, pad),) + ((0, 0),) * (mask.ndim - 1))

    vmem_limit = _vmem_limit_bytes()
    TB, TS, TH = _pick_tiles(B_pad, S, H, itemsize, vmem_limit)
    grid = (B_pad // TB, H // TH, S // TS)

    if use_mxu:
        mask_spec = pl.BlockSpec((TB, 1, TS), lambda b, h, s: (b, 0, s))
    else:
        mask_spec = pl.BlockSpec((TB, TS), lambda b, h, s: (b, s))

    cost = pl.CostEstimate(
        flops=2 * B_pad * S * H,
        transcendentals=0,
        bytes_accessed=(B_pad * S * H * itemsize                       # embeddings
                        + grid[1] * B_pad * S * mask.dtype.itemsize    # mask per H blk
                        + B_pad * H * 4),                              # output
    )

    out = pl.pallas_call(
        functools.partial(_mean_pool_kernel, use_mxu=use_mxu),
        out_shape=jax.ShapeDtypeStruct((B_pad, H), jnp.float32),
        grid_spec=pltpu.PrefetchScalarGridSpec(
            num_scalar_prefetch=0,
            grid=grid,
            in_specs=[
                pl.BlockSpec((TB, TS, TH), lambda b, h, s: (b, s, h)),
                mask_spec,
            ],
            out_specs=pl.BlockSpec((TB, TH), lambda b, h, s: (b, h)),
            scratch_shapes=[pltpu.VMEM((TB, 1), jnp.float32)],
        ),
        compiler_params=pltpu.CompilerParams(
            dimension_semantics=("parallel", "parallel", "arbitrary"),
            vmem_limit_bytes=vmem_limit,
        ),
        cost_estimate=cost,
    )(token_embeddings, mask)

    return out[:B] if B_pad != B else out


def _reference(model_output, attention_mask):
    token_embeddings = model_output[0].astype(jnp.float32)
    m = attention_mask.astype(jnp.float32)[..., None]
    sum_emb = jnp.sum(token_embeddings * m, axis=1)
    sum_mask = jnp.clip(jnp.sum(m, axis=1), 1e-9, None)
    return sum_emb / sum_mask


if __name__ == "__main__":
    key = jax.random.PRNGKey(0)
    k_emb, k_mask = jax.random.split(key)

    # --- small f32 case (exercises batch padding + the exact VPU path) -----
    B, S, H = 2, 8, 32
    token_embeddings = jax.random.normal(k_emb, (B, S, H), dtype=jnp.float32)
    attention_mask = (jax.random.uniform(k_mask, (B, S)) > 0.3).astype(jnp.int32)
    model_output = (token_embeddings,)   # mimics the HF model_output tuple

    out = jax.block_until_ready(mean_pooling(model_output, attention_mask))
    ref = _reference(model_output, attention_mask)
    assert out.shape == (B, H) and out.dtype == jnp.float32, out.shape
    assert jnp.allclose(out, ref, atol=1e-5, rtol=1e-5), "f32 mismatch vs reference"

    # --- bf16 case (exercises the MXU path, S/H tiling and the 1e-9 clamp) -
    B2, S2, H2 = 8, 384, 384
    emb2 = jax.random.normal(k_emb, (B2, S2, H2), dtype=jnp.float32)
    mask2 = (jax.random.uniform(k_mask, (B2, S2)) > 0.3).astype(jnp.int32)
    mask2 = mask2.at[0].set(0)           # one fully-masked row -> clamp path
    emb2_bf16 = emb2.astype(jnp.bfloat16)

    out2 = jax.block_until_ready(mean_pooling((emb2_bf16,), mask2))
    ref2 = _reference((emb2_bf16,), mask2)
    assert out2.shape == (B2, H2) and out2.dtype == jnp.float32
    assert jnp.allclose(out2, ref2, atol=1e-2, rtol=1e-2), "bf16 mismatch vs reference"

    print("KERNEL_OK")
</pallas_src>

<mosaic_0001>
module attributes {stable_mosaic.version = 11 : i64} {
  func.func @_mean_pool_kernel(%arg0: i32, %arg1: i32, %arg2: i32, %arg3: memref<8x8x32xf32, #tpu.memory_space<vmem>>, %arg4: memref<8x8xf32, #tpu.memory_space<vmem>>, %arg5: memref<8x32xf32, #tpu.memory_space<vmem>>, %arg6: memref<8x1xf32, #tpu.memory_space<vmem>>) attributes {dimension_semantics = [#tpu.dimension_semantics<parallel>, #tpu.dimension_semantics<parallel>, #tpu.dimension_semantics<arbitrary>], iteration_bounds = array<i64: 1, 1, 1>, scalar_prefetch = 0 : i64, scratch_operands = 1 : i64, tpu.core_type = #tpu.core_type<tc>, window_params = [{transform_indices = @transform_0, window_bounds = array<i64: 8, 8, 32>}, {transform_indices = @transform_1, window_bounds = array<i64: 8, 8>}, {transform_indices = @transform_2, window_bounds = array<i64: 8, 32>}]} {
    %c0_i32 = arith.constant 0 : i32
    %0 = arith.cmpi eq, %arg2, %c0_i32 : i32
    %1 = arith.extui %0 : i1 to i32
    %c0_i32_0 = arith.constant 0 : i32
    %2 = arith.cmpi ne, %1, %c0_i32_0 : i32
    scf.if %2 {
      %cst_16 = arith.constant 0.000000e+00 : f32
      %20 = vector.broadcast %cst_16 : f32 to vector<8x32xf32>
      %c0_17 = arith.constant 0 : index
      %c0_18 = arith.constant 0 : index
      %21 = vector.load %arg5[%c0_17, %c0_18] : memref<8x32xf32, #tpu.memory_space<vmem>>, vector<8x32xf32>
      tpu.vector_store %arg5[%c0_17, %c0_18], %20 {strides = array<i32>} : memref<8x32xf32, #tpu.memory_space<vmem>>, vector<8x32xf32>,
      %cst_19 = arith.constant 0.000000e+00 : f32
      %22 = vector.broadcast %cst_19 : f32 to vector<8x1xf32>
      %c0_20 = arith.constant 0 : index
      %c0_21 = arith.constant 0 : index
      %23 = vector.load %arg6[%c0_20, %c0_21] : memref<8x1xf32, #tpu.memory_space<vmem>>, vector<8x1xf32>
      tpu.vector_store %arg6[%c0_20, %c0_21], %22 {strides = array<i32>} : memref<8x1xf32, #tpu.memory_space<vmem>>, vector<8x1xf32>,
    } else {
    }
    %c0 = arith.constant 0 : index
    %c0_1 = arith.constant 0 : index
    %3 = vector.load %arg4[%c0, %c0_1] : memref<8x8xf32, #tpu.memory_space<vmem>>, vector<8x8xf32>
    %c0_2 = arith.constant 0 : index
    %c0_3 = arith.constant 0 : index
    %4 = vector.load %arg5[%c0_2, %c0_3] : memref<8x32xf32, #tpu.memory_space<vmem>>, vector<8x32xf32>
    %c0_4 = arith.constant 0 : index
    %c0_5 = arith.constant 0 : index
    %c0_6 = arith.constant 0 : index
    %5 = vector.load %arg3[%c0_4, %c0_5, %c0_6] : memref<8x8x32xf32, #tpu.memory_space<vmem>>, vector<8x8x32xf32>
    %6 = vector.shape_cast %3 : vector<8x8xf32> to vector<8x8x1xf32>
    %7 = vector.broadcast %6 : vector<8x8x1xf32> to vector<8x8x32xf32>
    %8 = arith.mulf %5, %7 : vector<8x8x32xf32>
    %cst = arith.constant dense<0.000000e+00> : vector<8x32xf32>
    %9 = vector.multi_reduction <add>, %8, %cst [1] : vector<8x8x32xf32> to vector<8x32xf32>
    %10 = arith.addf %4, %9 : vector<8x32xf32>
    %c0_7 = arith.constant 0 : index
    %c0_8 = arith.constant 0 : index
    %11 = vector.load %arg5[%c0_7, %c0_8] : memref<8x32xf32, #tpu.memory_space<vmem>>, vector<8x32xf32>
    tpu.vector_store %arg5[%c0_7, %c0_8], %10 {strides = array<i32>} : memref<8x32xf32, #tpu.memory_space<vmem>>, vector<8x32xf32>,
    %c0_9 = arith.constant 0 : index
    %c0_10 = arith.constant 0 : index
    %12 = vector.load %arg6[%c0_9, %c0_10] : memref<8x1xf32, #tpu.memory_space<vmem>>, vector<8x1xf32>
    %cst_11 = arith.constant dense<0.000000e+00> : vector<8xf32>
    %13 = vector.multi_reduction <add>, %3, %cst_11 [1] : vector<8x8xf32> to vector<8xf32>
    %14 = vector.shape_cast %13 : vector<8xf32> to vector<8x1xf32>
    %15 = arith.addf %12, %14 : vector<8x1xf32>
    %c0_12 = arith.constant 0 : index
    %c0_13 = arith.constant 0 : index
    %16 = vector.load %arg6[%c0_12, %c0_13] : memref<8x1xf32, #tpu.memory_space<vmem>>, vector<8x1xf32>
    tpu.vector_store %arg6[%c0_12, %c0_13], %15 {strides = array<i32>} : memref<8x1xf32, #tpu.memory_space<vmem>>, vector<8x1xf32>,
    %c0_i32_14 = arith.constant 0 : i32
    %17 = arith.cmpi eq, %arg2, %c0_i32_14 : i32
    %18 = arith.extui %17 : i1 to i32
    %c0_i32_15 = arith.constant 0 : i32
    %19 = arith.cmpi ne, %18, %c0_i32_15 : i32
    scf.if %19 {
      %c0_16 = arith.constant 0 : index
      %c0_17 = arith.constant 0 : index
      %20 = vector.load %arg6[%c0_16, %c0_17] : memref<8x1xf32, #tpu.memory_space<vmem>>, vector<8x1xf32>
      %cst_18 = arith.constant 9.99999971E-10 : f32
      %21 = vector.broadcast %cst_18 : f32 to vector<8x1xf32>
      %22 = arith.maximumf %20, %21 : vector<8x1xf32>
      %c0_19 = arith.constant 0 : index
      %c0_20 = arith.constant 0 : index
      %23 = vector.load %arg5[%c0_19, %c0_20] : memref<8x32xf32, #tpu.memory_space<vmem>>, vector<8x32xf32>
      %24 = tpu.reciprocal %22 : vector<8x1xf32> -> vector<8x1xf32>
      %25 = vector.broadcast %24 : vector<8x1xf32> to vector<8x32xf32>
      %26 = arith.mulf %23, %25 : vector<8x32xf32>
      %c0_21 = arith.constant 0 : index
      %c0_22 = arith.constant 0 : index
      %27 = vector.load %arg5[%c0_21, %c0_22] : memref<8x32xf32, #tpu.memory_space<vmem>>, vector<8x32xf32>
      tpu.vector_store %arg5[%c0_21, %c0_22], %26 {strides = array<i32>} : memref<8x32xf32, #tpu.memory_space<vmem>>, vector<8x32xf32>,
    } else {
    }
    return
  }
  func.func @transform_0(%arg0: i32, %arg1: i32, %arg2: i32) -> (i32, i32, i32) {
    %c0_i32 = arith.constant 0 : i32
    return %arg0, %arg2, %arg1 : i32, i32, i32
  }
  func.func @transform_1(%arg0: i32, %arg1: i32, %arg2: i32) -> (i32, i32) {
    %c0_i32 = arith.constant 0 : i32
    return %arg0, %arg2 : i32, i32
  }
  func.func @transform_2(%arg0: i32, %arg1: i32, %arg2: i32) -> (i32, i32) {
    %c0_i32 = arith.constant 0 : i32
    return %arg0, %arg1 : i32, i32
  }
}

</mosaic_0001>

<llo_original>
// kernel: tpu_custom_call.1
$region0: #{tpu_custom_call.1}
  #allocation0 [shape = 'u32[]', space=smem, size = 0x4, offset = 0x4, fixed_abs, tag = 'smem constant byte address 0x4 - core index']
  #allocation1 [shape = 'u32[72,128]{1,0:T(1,128)}', space=vmem, size = 0x9000, scoped, tag = 'internal scratch']
  #allocation2 [shape = 'f32[8,1]{1,0:T(8,128)}', space=vmem, size = 0x1000, scoped, tag = 'scratch operand']
  %s0 = inlined_call_operand.hbm [shape: f32[8,8,32], index: 0, kind: input, shape index: {}]
  %s1 = inlined_call_operand.hbm [shape: f32[8,8], index: 1, kind: input, shape index: {}]
  %s2 = inlined_call_operand.hbm [shape: f32[8,32], index: 2, kind: output, shape index: {}]
  %s3 = sld [smem:[#allocation0]]
  $region34: #{tpu_custom_call.1} parent=0
    _
  %s5 = ssub.s32 1, %s3
  %s6 = scalar_select 0, %s5, %s3
  $region1: #{tpu_custom_call.1} parent=0
    #allocation3 [shape = 'u8[32768]{0}', space=vmem, size = 0x8000, scoped, tag = 'input window, operand 0, single buffered']
    #allocation4 [shape = 's32[1]{0}', space=sflag, size = 0x4, scoped, tag = 'scoped memory for tpu_custom_call.1']
    #allocation5 [shape = 's32[1]{0}', space=sflag, size = 0x4, scoped, tag = 'scoped memory for tpu_custom_call.1']
    #allocation6 [shape = 'u8[4096]{0}', space=vmem, size = 0x1000, scoped, tag = 'input window, operand 1, single buffered']
    #allocation7 [shape = 's32[1]{0}', space=sflag, size = 0x4, scoped, tag = 'scoped memory for tpu_custom_call.1']
    #allocation8 [shape = 'u8[4096]{0}', space=vmem, size = 0x1000, scoped, tag = 'output window, operand 0, single buffered']
    %7 = vsyncpa [#allocation4], 0
    %8 = vsyncpa [#allocation7], 0
    %9 = vsyncpa [#allocation5], 0
    // Predicated region
    $region2: #{tpu_custom_call.1} parent=1 // pred_check
      _
    $region3: #{tpu_custom_call.1} parent=1 // pred_check_branch
      %11 = sbr.rel (0) target = $region5
    $region4: #{tpu_custom_call.1} parent=1 // pred_region
      %13 = vsyncadd [#allocation4], 0
      %s14 = sshll.u32 %s0, 4
      %s15 = int_to_ptr.hbm [resolvable:$true] %s14
      %s16 = sshll.u32 [#allocation3], 4
      %s17 = int_to_ptr.vmem [resolvable:$true] %s16
      %22 = dma.hbm_to_vmem [thread:$0]  %s15, 1024, %s17, [#allocation4], 128, 128, 8
    $region5: #{tpu_custom_call.1} parent=1 // pred_fallthru
      _
    // Predicated region
    $region6: #{tpu_custom_call.1} parent=1 // pred_check
      _
    $region7: #{tpu_custom_call.1} parent=1 // pred_check_branch
      %24 = sbr.rel (0) target = $region9
    $region8: #{tpu_custom_call.1} parent=1 // pred_region
      %26 = vsyncadd [#allocation7], 0
      %s28 = sshll.u32 %s1, 4
      %s29 = int_to_ptr.hbm [resolvable:$true] %s28
      %s30 = sshll.u32 [#allocation6], 4
      %s31 = int_to_ptr.vmem [resolvable:$true] %s30
      %33 = dma.hbm_to_vmem [thread:$0]  %s29, 128, %s31, [#allocation7]
    $region9: #{tpu_custom_call.1} parent=1 // pred_fallthru
      _
    // Predicated region
    $region10: #{tpu_custom_call.1} parent=1 // pred_check
      _
    $region11: #{tpu_custom_call.1} parent=1 // pred_check_branch
      %35 = sbr.rel (0) target = $region13
    $region12: #{tpu_custom_call.1} parent=1 // pred_region
      %37 = dma.done [#allocation4], 1024
    $region13: #{tpu_custom_call.1} parent=1 // pred_fallthru
      _
    // Predicated region
    $region14: #{tpu_custom_call.1} parent=1 // pred_check
      _
    $region15: #{tpu_custom_call.1} parent=1 // pred_check_branch
      %39 = sbr.rel (0) target = $region17
    $region16: #{tpu_custom_call.1} parent=1 // pred_region
      %41 = dma.done [#allocation7], 128
    $region17: #{tpu_custom_call.1} parent=1 // pred_fallthru
      _
    %p42 = scmp.eq.s32.totalorder 0, 0
    // Predicated region
    $region18: #{tpu_custom_call.1} parent=1 // pred_check
      %p43 = pneg %p42
    $region19: #{tpu_custom_call.1} parent=1 // pred_check_branch
      %45 = sbr.rel (%p43) target = $region21
    $region20: #{tpu_custom_call.1} parent=1 // pred_region
      %vm46 = vcmask 261120
      %47 = vst.msk [vmem:[#allocation8] sm:$0xff] %vm46, 0.0
      %vm48 = vcmask 7168
      %49 = vst.msk [vmem:[#allocation2] sm:$0xff] %vm48, 0.0
    $region21: #{tpu_custom_call.1} parent=1 // pred_fallthru
      _
    %v50 = vld [vmem:[#allocation6] sm:$0xff]
    %v51 = vld [vmem:[#allocation8] sm:$0xff]
    %v52 = vld [vmem:[#allocation3] sm:$0xff]
    %v53 = vld [vmem:[#allocation3 + $0x8] sm:$0xff]
    %v54 = vld [vmem:[#allocation3 + $0x10] sm:$0xff]
    %v55 = vld [vmem:[#allocation3 + $0x18] sm:$0xff]
    %v56 = vld [vmem:[#allocation3 + $0x20] sm:$0xff]
    %v57 = vld [vmem:[#allocation3 + $0x28] sm:$0xff]
    %v58 = vld [vmem:[#allocation3 + $0x30] sm:$0xff]
    %v59 = vld [vmem:[#allocation3 + $0x38] sm:$0xff]
    %v60 = vperm.slane %v50, 0
    %v61 = vlaneseq
    %v62 = vshrl.u32 %v61, 7
    %64 = vset.pattern.permute.xlu0 %v62
    %65 = vperm.xlu0 %64, %v60
    %v66 = vpop.permute.xlu0 %65
    %v67 = vperm.slane %v50, 1
    %v68 = vlaneseq
    %v69 = vshrl.u32 %v68, 7
    %71 = vset.pattern.permute.xlu0 %v69
    %72 = vperm.xlu0 %71, %v67
    %v73 = vpop.permute.xlu0 %72
    %v74 = vperm.slane %v50, 2
    %v75 = vlaneseq
    %v76 = vshrl.u32 %v75, 7
    %78 = vset.pattern.permute.xlu0 %v76
    %79 = vperm.xlu0 %78, %v74
    %v80 = vpop.permute.xlu0 %79
    %v81 = vperm.slane %v50, 3
    %v82 = vlaneseq
    %v83 = vshrl.u32 %v82, 7
    %85 = vset.pattern.permute.xlu0 %v83
    %86 = vperm.xlu0 %85, %v81
    %v87 = vpop.permute.xlu0 %86
    %v88 = vperm.slane %v50, 4
    %v89 = vlaneseq
    %v90 = vshrl.u32 %v89, 7
    %92 = vset.pattern.permute.xlu0 %v90
    %93 = vperm.xlu0 %92, %v88
    %v94 = vpop.permute.xlu0 %93
    %v95 = vperm.slane %v50, 5
    %v96 = vlaneseq
    %v97 = vshrl.u32 %v96, 7
    %99 = vset.pattern.permute.xlu0 %v97
    %100 = vperm.xlu0 %99, %v95
    %v101 = vpop.permute.xlu0 %100
    %v102 = vperm.slane %v50, 6
    %v103 = vlaneseq
    %v104 = vshrl.u32 %v103, 7
    %106 = vset.pattern.permute.xlu0 %v104
    %107 = vperm.xlu0 %106, %v102
    %v108 = vpop.permute.xlu0 %107
    %v109 = vperm.slane %v50, 7
    %v110 = vlaneseq
    %v111 = vshrl.u32 %v110, 7
    %113 = vset.pattern.permute.xlu0 %v111
    %114 = vperm.xlu0 %113, %v109
    %v115 = vpop.permute.xlu0 %114
    %v116 = vmul.f32 %v52, %v66
    %v117 = vmul.f32 %v53, %v73
    %v118 = vmul.f32 %v54, %v80
    %v119 = vmul.f32 %v55, %v87
    %v120 = vmul.f32 %v56, %v94
    %v121 = vmul.f32 %v57, %v101
    %v122 = vmul.f32 %v58, %v108
    %v123 = vmul.f32 %v59, %v115
    %vm124 = vcmask 261120
    %v125 = vsel %vm124, %v116, 0.0
    %v126 = vrot.slane %v125, 4
    %v127 = vadd.f32 %v125, %v126
    %v128 = vrot.slane %v127, 2
    %v129 = vadd.f32 %v127, %v128
    %v130 = vrot.slane %v129, 1
    %v131 = vadd.f32 %v129, %v130
    %v132 = vsel %vm124, %v117, 0.0
    %v133 = vrot.slane %v132, 4
    %v134 = vadd.f32 %v132, %v133
    %v135 = vrot.slane %v134, 2
    %v136 = vadd.f32 %v134, %v135
    %v137 = vrot.slane %v136, 1
    %v138 = vadd.f32 %v136, %v137
    %v139 = vsel %vm124, %v118, 0.0
    %v140 = vrot.slane %v139, 4
    %v141 = vadd.f32 %v139, %v140
    %v142 = vrot.slane %v141, 2
    %v143 = vadd.f32 %v141, %v142
    %v144 = vrot.slane %v143, 1
    %v145 = vadd.f32 %v143, %v144
    %v146 = vsel %vm124, %v119, 0.0
    %v147 = vrot.slane %v146, 4
    %v148 = vadd.f32 %v146, %v147
    %v149 = vrot.slane %v148, 2
    %v150 = vadd.f32 %v148, %v149
    %v151 = vrot.slane %v150, 1
    %v152 = vadd.f32 %v150, %v151
    %v153 = vsel %vm124, %v120, 0.0
    %v154 = vrot.slane %v153, 4
    %v155 = vadd.f32 %v153, %v154
    %v156 = vrot.slane %v155, 2
    %v157 = vadd.f32 %v155, %v156
    %v158 = vrot.slane %v157, 1
    %v159 = vadd.f32 %v157, %v158
    %v160 = vsel %vm124, %v121, 0.0
    %v161 = vrot.slane %v160, 4
    %v162 = vadd.f32 %v160, %v161
    %v163 = vrot.slane %v162, 2
    %v164 = vadd.f32 %v162, %v163
    %v165 = vrot.slane %v164, 1
    %v166 = vadd.f32 %v164, %v165
    %v167 = vsel %vm124, %v122, 0.0
    %v168 = vrot.slane %v167, 4
    %v169 = vadd.f32 %v167, %v168
    %v170 = vrot.slane %v169, 2
    %v171 = vadd.f32 %v169, %v170
    %v172 = vrot.slane %v171, 1
    %v173 = vadd.f32 %v171, %v172
    %v174 = vsel %vm124, %v123, 0.0
    %v175 = vrot.slane %v174, 4
    %v176 = vadd.f32 %v174, %v175
    %v177 = vrot.slane %v176, 2
    %v178 = vadd.f32 %v176, %v177
    %v179 = vrot.slane %v178, 1
    %v180 = vadd.f32 %v178, %v179
    %vm189 = vcmask 1041409
    %v190 = vsel %vm189, %v138, %v131
    %vm191 = vcmask 1042434
    %v192 = vsel %vm191, %v145, %v190
    %vm193 = vcmask 1043459
    %v194 = vsel %vm193, %v152, %v192
    %vm195 = vcmask 1044484
    %v196 = vsel %vm195, %v159, %v194
    %vm197 = vcmask 1045509
    %v198 = vsel %vm197, %v166, %v196
    %vm199 = vcmask 1046534
    %v200 = vsel %vm199, %v173, %v198
    %vm201 = vcmask 1047559
    %v202 = vsel %vm201, %v180, %v200
    %v204 = vadd.f32 %v51, %v202
    %205 = vst.msk [vmem:[#allocation8] sm:$0xff] %vm124, %v204
    %v206 = vld [vmem:[#allocation2] sm:$0xff]
    %vm207 = vcmask 64512
    %v208 = vsel %vm207, %v50, 0.0
    %209 = vadd.xlane.f32.xlu0 %v208
    %v210 = vpop.xlane.xlu0 %209
    %v211 = vadd.f32 %v206, %v210
    %vm212 = vcmask 7168
    %213 = vst.msk [vmem:[#allocation2] sm:$0xff] %vm212, %v211
    // Predicated region
    $region22: #{tpu_custom_call.1} parent=1 // pred_check
      %p214 = pneg %p42
    $region23: #{tpu_custom_call.1} parent=1 // pred_check_branch
      %216 = sbr.rel (%p214) target = $region25
    $region24: #{tpu_custom_call.1} parent=1 // pred_region
      %v217 = vld [vmem:[#allocation2] sm:$0xff]
      %v218 = vmax.f32 %v217, 1e-09
      %v219 = vld [vmem:[#allocation8] sm:$0xff]
      %v220 = vrcp.pop %v218
      %v221 = vmul.f32 %v218, %v220
      %v222 = vsub.f32 1.0, %v221
      %v223 = vmul.f32 %v220, %v222
      %v224 = vadd.f32 %v220, %v223
      %vm225 = vweird.f32 %v218
      %vm226 = vweird.f32 %v220
      %vm227 = vmor %vm225, %vm226
      %v228 = vsel %vm227, %v220, %v224
      %v229 = vand.u32 2147483647, %v218
      %vm230 = vcmp.eq.f32.partialorder %v229, 8.507059e+37
      %v231 = vand.u32 %v218, 2147483648
      %v232 = vor.u32 1.1754944e-38, %v231
      %v233 = vsel %vm230, %v232, %v228
      %235 = vset.pattern.permute.xlu0 0
      %236 = vperm.xlu0 %235, %v233
      %v237 = vpop.permute.xlu0 %236
      %v239 = vmul.f32 %v219, %v237
      %240 = vst.msk [vmem:[#allocation8] sm:$0xff] %vm124, %v239
    $region25: #{tpu_custom_call.1} parent=1 // pred_fallthru
      _
    // Predicated region
    $region26: #{tpu_custom_call.1} parent=1 // pred_check
      _
    $region27: #{tpu_custom_call.1} parent=1 // pred_check_branch
      %242 = sbr.rel (0) target = $region29
    $region28: #{tpu_custom_call.1} parent=1 // pred_region
      %244 = vsyncadd [#allocation5], 0
      %s246 = sshll.u32 [#allocation8], 4
      %s247 = int_to_ptr.vmem [resolvable:$true] %s246
      %s248 = sshll.u32 %s2, 4
      %s249 = int_to_ptr.hbm [resolvable:$true] %s248
      %251 = dma.vmem_to_hbm [thread:$0]  %s247, 128, %s249, [#allocation5]
    $region29: #{tpu_custom_call.1} parent=1 // pred_fallthru
      _
    // Predicated region
    $region30: #{tpu_custom_call.1} parent=1 // pred_check
      _
    $region31: #{tpu_custom_call.1} parent=1 // pred_check_branch
      %253 = sbr.rel (0) target = $region33
    $region32: #{tpu_custom_call.1} parent=1 // pred_region
      %255 = dma.done [#allocation5], 128
    $region33: #{tpu_custom_call.1} parent=1 // pred_fallthru
      _
    %256 = vsyncpa [#allocation4], 1
    %257 = vsyncpa [#allocation7], 1
    %258 = vsyncpa [#allocation5], 1

</llo_original>
